<compile_context>
chip_gen: v7x
topology: tpu7x:2x2x1
jax: 0.10.0
libtpu: 0.0.40
codegen_flags: <defaults>
</compile_context>

<pallas_src>
import functools

import jax
import jax.numpy as jnp
from jax import lax
from jax.experimental import pallas as pl
from jax.experimental.pallas import tpu as pltpu


def block_kernel(x_ref, t1_ref, t2_ref, shift_ref, out_ref):
    # x_ref:     (1, H, L)   f32   lane-packed input (L = lp*W*C); also the residual
    # t1_ref:    (3, L, L)   bf16  block-diag width-Toeplitz conv1 weights (BN2 scale folded)
    # t2_ref:    (3, L, L)   bf16  block-diag width-Toeplitz conv2 weights (BN2 scale folded)
    # shift_ref: (1, L)      f32   BN2 shift, tiled across (image, W)
    # out_ref:   (1, H, L)   bf16
    H = out_ref.shape[1]

    x32 = x_ref[0]                                   # (H, L) f32 (residual stays f32)
    shift = shift_ref[...]                           # (1, L) f32
    rows = lax.broadcasted_iota(jnp.int32, (H, 1), 0)
    not_top = rows > 0                               # output row 0 has no row above
    not_bot = rows < H - 1                           # output row H-1 has no row below

    def conv3x3(src_f32, t_ref):
        # out[h] = sum_dy src[h + dy - 1] @ T[dy], rows outside [0, H) are zero.
        # dy = 1 (same row): initializes the accumulator (no zeros / roll / mask).
        acc = jnp.dot(src_f32.astype(jnp.bfloat16), t_ref[1],
                      preferred_element_type=jnp.float32)
        # dy = 0 (row above): shift source down by one row, zero output row 0.
        up = jnp.where(not_top, pltpu.roll(src_f32, 1, 0), 0.0).astype(jnp.bfloat16)
        acc += jnp.dot(up, t_ref[0], preferred_element_type=jnp.float32)
        # dy = 2 (row below): shift source up by one row, zero output row H-1.
        down = jnp.where(not_bot, pltpu.roll(src_f32, H - 1, 0), 0.0).astype(jnp.bfloat16)
        acc += jnp.dot(down, t_ref[2], preferred_element_type=jnp.float32)
        return acc

    # conv1 -> batch_norm2 (scale folded into t1, shift added here) -> ReLU
    y1 = jnp.maximum(conv3x3(x32, t1_ref) + shift, 0.0)
    # conv2 -> batch_norm2 (again, as in the PyTorch forward)
    y2 = conv3x3(y1, t2_ref) + shift
    # residual add (identity == f32 input, Cin == Cout) -> ReLU
    out_ref[0] = jnp.maximum(y2 + x32, 0.0).astype(out_ref.dtype)


def _lane_pack_factor(N, WC, target=128):
    """How many images to pack into the lane axis to reach a 128-wide last dim."""
    lp = 1
    while WC * lp < target and N % (2 * lp) == 0:
        lp *= 2
    return lp


def prepare_block_params(w1, w2, gamma2, beta2, mean2, var2, *, W, lp, eps=1e-5):
    """One-time weight prep (hoisted out of the per-call path).

    Folds eval-mode BN2 into scale/shift, folds the scale into both conv
    weights, and builds the lane-block-diagonal width-Toeplitz band matrices:
        T[dy] = sum_dx kron(eye(W, k=1-dx), w[dy, dx])        (W*Ci, W*Co)
        Tbd[dy] = kron(eye(lp), T[dy])                        (lp*W*Ci, lp*W*Co)
    so (packed row) @ Tbd[dy] performs the dx taps + channel contraction with
    W-direction zero padding, independently per packed image.
    """
    inv_std = 1.0 / jnp.sqrt(var2.astype(jnp.float32) + eps)
    scale = gamma2.astype(jnp.float32) * inv_std                          # (Cout,)
    shift = beta2.astype(jnp.float32) - mean2.astype(jnp.float32) * scale
    w1s = w1.astype(jnp.float32) * scale[None, None, None, :]
    w2s = w2.astype(jnp.float32) * scale[None, None, None, :]

    def toeplitz(w):
        ci, co = w.shape[2], w.shape[3]
        eye_lp = jnp.eye(lp, dtype=jnp.float32)
        mats = []
        for dy in range(3):
            t = jnp.zeros((W * ci, W * co), jnp.float32)
            for dx in range(3):
                t = t + jnp.kron(jnp.eye(W, W, k=1 - dx, dtype=jnp.float32), w[dy, dx])
            mats.append(jnp.kron(eye_lp, t))        # block-diag across packed images
        return jnp.stack(mats).astype(jnp.bfloat16)  # (3, lp*W*ci, lp*W*co)

    t1 = toeplitz(w1s)
    t2 = toeplitz(w2s)
    shift_row = jnp.tile(shift, W * lp).reshape(1, -1)   # (1, lp*W*Cout) f32
    return t1, t2, shift_row


@functools.partial(jax.jit, static_argnames=("lp",))
def resnet_block_forward(x_nchw, t1, t2, shift_row, *, lp):
    """stride=1, i_downsample=None Block forward. x: (N, Cin, H, W) -> (N, Cout, H, W)."""
    N, C, H, W = x_nchw.shape
    L = lp * W * C
    assert N % lp == 0, "batch must be divisible by the lane-pack factor"
    assert t1.shape == (3, L, L) and t2.shape == (3, L, L)
    nb = N // lp

    # Lane-packed f32 activations: (nb, H, lp*W*C); lanes ordered (image, w, c).
    x_nhwc = jnp.transpose(x_nchw, (0, 2, 3, 1)).astype(jnp.float32)
    xp = x_nhwc.reshape(nb, lp, H, W * C).transpose(0, 2, 1, 3).reshape(nb, H, L)

    out_packed = pl.pallas_call(
        block_kernel,
        out_shape=jax.ShapeDtypeStruct((nb, H, L), jnp.bfloat16),
        grid_spec=pltpu.PrefetchScalarGridSpec(
            num_scalar_prefetch=0,
            grid=(nb,),
            in_specs=[
                pl.BlockSpec((1, H, L), lambda n: (n, 0, 0)),
                pl.BlockSpec((3, L, L), lambda n: (0, 0, 0)),
                pl.BlockSpec((3, L, L), lambda n: (0, 0, 0)),
                pl.BlockSpec((1, L), lambda n: (0, 0)),
            ],
            out_specs=pl.BlockSpec((1, H, L), lambda n: (n, 0, 0)),
        ),
        compiler_params=pltpu.CompilerParams(
            dimension_semantics=("parallel",),
            vmem_limit_bytes=32 * 1024 * 1024),
    )(xp, t1, t2, shift_row)

    # TODO(synk): in a full network keep the bf16 lane-packed layout between
    # blocks; the f32 NCHW unpack below exists only for this standalone test.
    out = out_packed.astype(jnp.float32).reshape(nb, H, lp, W, C)
    out = out.transpose(0, 2, 1, 3, 4).reshape(N, H, W, C)
    return jnp.transpose(out, (0, 3, 1, 2))


def _ref_forward(x_nchw, w1, w2, gamma2, beta2, mean2, var2, eps=1e-5):
    """Pure-JAX f32 reference of the PyTorch forward (eval-mode BN)."""
    x = jnp.transpose(x_nchw, (0, 2, 3, 1)).astype(jnp.float32)

    def conv3x3(z, w):
        return lax.conv_general_dilated(
            z, w, (1, 1), ((1, 1), (1, 1)),
            dimension_numbers=("NHWC", "HWIO", "NHWC"),
            precision=lax.Precision.HIGHEST)

    def bn2(z):
        inv_std = 1.0 / jnp.sqrt(var2 + eps)
        return (z - mean2) * inv_std * gamma2 + beta2

    identity = x
    y = jax.nn.relu(bn2(conv3x3(x, w1)))
    y = bn2(conv3x3(y, w2))
    y = jax.nn.relu(y + identity)
    return jnp.transpose(y, (0, 3, 1, 2))


if __name__ == "__main__":
    key = jax.random.PRNGKey(0)
    k_x, k_w1, k_w2, k_g, k_b, k_m, k_v = jax.random.split(key, 7)

    N, C, H, W = 2, 4, 16, 16          # in_channels == out_channels, stride=1
    x = jax.random.normal(k_x, (N, C, H, W), dtype=jnp.float32)

    # Conv weights in HWIO layout (3, 3, Cin, Cout), bias=False as in the module.
    w1 = 0.1 * jax.random.normal(k_w1, (3, 3, C, C), dtype=jnp.float32)
    w2 = 0.1 * jax.random.normal(k_w2, (3, 3, C, C), dtype=jnp.float32)

    # BatchNorm2 synthetic parameters (inference mode).
    gamma2 = 0.5 + jax.random.uniform(k_g, (C,), dtype=jnp.float32)
    beta2 = 0.1 * jax.random.normal(k_b, (C,), dtype=jnp.float32)
    mean2 = 0.1 * jax.random.normal(k_m, (C,), dtype=jnp.float32)
    var2 = 0.5 + jax.random.uniform(k_v, (C,), dtype=jnp.float32)

    # One-time weight prep (cached across calls in a real model).
    lp = _lane_pack_factor(N, W * C)                 # -> 2: lane dim lp*W*C = 128
    t1, t2, shift_row = prepare_block_params(
        w1, w2, gamma2, beta2, mean2, var2, W=W, lp=lp)

    out = resnet_block_forward(x, t1, t2, shift_row, lp=lp)
    out = jax.block_until_ready(out)

    ref = _ref_forward(x, w1, w2, gamma2, beta2, mean2, var2)
    assert out.shape == (N, C, H, W)
    # bf16 matmul operands + bf16 kernel output (f32 accumulate / elementwise)
    # vs pure-f32 reference.
    assert jnp.allclose(out, ref, rtol=3e-2, atol=3e-2), "mismatch vs reference"

    print("KERNEL_OK")
</pallas_src>

<mosaic_0001>
module attributes {stable_mosaic.version = 11 : i64} {
  func.func @block_kernel(%arg0: i32, %arg1: memref<1x16x128xf32, #tpu.memory_space<vmem>>, %arg2: memref<3x128x128xbf16, #tpu.memory_space<vmem>>, %arg3: memref<3x128x128xbf16, #tpu.memory_space<vmem>>, %arg4: memref<1x128xf32, #tpu.memory_space<vmem>>, %arg5: memref<1x16x128xbf16, #tpu.memory_space<vmem>>) attributes {dimension_semantics = [#tpu.dimension_semantics<parallel>], iteration_bounds = array<i64: 1>, scalar_prefetch = 0 : i64, scratch_operands = 0 : i64, tpu.core_type = #tpu.core_type<tc>, window_params = [{transform_indices = @transform_0, window_bounds = array<i64: 1, 16, 128>}, {pipeline_mode = #tpu.pipeline_mode<synchronous>, transform_indices = @transform_1, window_bounds = array<i64: 3, 128, 128>}, {pipeline_mode = #tpu.pipeline_mode<synchronous>, transform_indices = @transform_2, window_bounds = array<i64: 3, 128, 128>}, {pipeline_mode = #tpu.pipeline_mode<synchronous>, transform_indices = @transform_3, window_bounds = array<i64: 1, 128>}, {transform_indices = @transform_4, window_bounds = array<i64: 1, 16, 128>}]} {
    %c0 = arith.constant 0 : index
    %c0_0 = arith.constant 0 : index
    %c0_1 = arith.constant 0 : index
    %0 = vector.load %arg1[%c0, %c0_0, %c0_1] : memref<1x16x128xf32, #tpu.memory_space<vmem>>, vector<1x16x128xf32>
    %1 = vector.shape_cast %0 : vector<1x16x128xf32> to vector<16x128xf32>
    %c0_2 = arith.constant 0 : index
    %c0_3 = arith.constant 0 : index
    %2 = vector.load %arg4[%c0_2, %c0_3] : memref<1x128xf32, #tpu.memory_space<vmem>>, vector<1x128xf32>
    %3 = tpu.iota {dimensions = array<i32: 0>} : vector<16x1xi32>
    %c0_i32 = arith.constant 0 : i32
    %4 = vector.broadcast %c0_i32 : i32 to vector<16x1xi32>
    %5 = arith.cmpi sgt, %3, %4 : vector<16x1xi32>
    %c15_i32 = arith.constant 15 : i32
    %6 = vector.broadcast %c15_i32 : i32 to vector<16x1xi32>
    %7 = arith.cmpi slt, %3, %6 : vector<16x1xi32>
    %8 = arith.truncf %1 : vector<16x128xf32> to vector<16x128xbf16>
    %c1 = arith.constant 1 : index
    %c0_4 = arith.constant 0 : index
    %c0_5 = arith.constant 0 : index
    %9 = vector.load %arg2[%c1, %c0_4, %c0_5] : memref<3x128x128xbf16, #tpu.memory_space<vmem>>, vector<1x128x128xbf16>
    %10 = vector.shape_cast %9 : vector<1x128x128xbf16> to vector<128x128xbf16>
    %cst = arith.constant dense<0.000000e+00> : vector<16x128xf32>
    %11 = tpu.matmul %8, %10, %cst {dimension_numbers = #tpu.dot_dimension_numbers<[1], [0], [0], [1], [0, 0, 1, 1], [], []>} : vector<16x128xbf16>, vector<128x128xbf16>, vector<16x128xf32> -> vector<16x128xf32>
    %c1_i32 = arith.constant 1 : i32
    %12 = tpu.dynamic_rotate %1 by %c1_i32 dim 0 : vector<16x128xf32>, i32 -> vector<16x128xf32>
    %cst_6 = arith.constant 0.000000e+00 : f32
    %13 = vector.shape_cast %5 : vector<16x1xi1> to vector<16x1xi1>
    %14 = vector.broadcast %13 : vector<16x1xi1> to vector<16x128xi1>
    %15 = vector.broadcast %cst_6 : f32 to vector<16x128xf32>
    %16 = arith.select %14, %12, %15 : vector<16x128xi1>, vector<16x128xf32>
    %17 = arith.truncf %16 : vector<16x128xf32> to vector<16x128xbf16>
    %c0_7 = arith.constant 0 : index
    %c0_8 = arith.constant 0 : index
    %c0_9 = arith.constant 0 : index
    %18 = vector.load %arg2[%c0_7, %c0_8, %c0_9] : memref<3x128x128xbf16, #tpu.memory_space<vmem>>, vector<1x128x128xbf16>
    %19 = vector.shape_cast %18 : vector<1x128x128xbf16> to vector<128x128xbf16>
    %cst_10 = arith.constant dense<0.000000e+00> : vector<16x128xf32>
    %20 = tpu.matmul %17, %19, %cst_10 {dimension_numbers = #tpu.dot_dimension_numbers<[1], [0], [0], [1], [0, 0, 1, 1], [], []>} : vector<16x128xbf16>, vector<128x128xbf16>, vector<16x128xf32> -> vector<16x128xf32>
    %21 = arith.addf %11, %20 : vector<16x128xf32>
    %c15_i32_11 = arith.constant 15 : i32
    %22 = tpu.dynamic_rotate %1 by %c15_i32_11 dim 0 : vector<16x128xf32>, i32 -> vector<16x128xf32>
    %cst_12 = arith.constant 0.000000e+00 : f32
    %23 = vector.shape_cast %7 : vector<16x1xi1> to vector<16x1xi1>
    %24 = vector.broadcast %23 : vector<16x1xi1> to vector<16x128xi1>
    %25 = vector.broadcast %cst_12 : f32 to vector<16x128xf32>
    %26 = arith.select %24, %22, %25 : vector<16x128xi1>, vector<16x128xf32>
    %27 = arith.truncf %26 : vector<16x128xf32> to vector<16x128xbf16>
    %c2 = arith.constant 2 : index
    %c0_13 = arith.constant 0 : index
    %c0_14 = arith.constant 0 : index
    %28 = vector.load %arg2[%c2, %c0_13, %c0_14] : memref<3x128x128xbf16, #tpu.memory_space<vmem>>, vector<1x128x128xbf16>
    %29 = vector.shape_cast %28 : vector<1x128x128xbf16> to vector<128x128xbf16>
    %cst_15 = arith.constant dense<0.000000e+00> : vector<16x128xf32>
    %30 = tpu.matmul %27, %29, %cst_15 {dimension_numbers = #tpu.dot_dimension_numbers<[1], [0], [0], [1], [0, 0, 1, 1], [], []>} : vector<16x128xbf16>, vector<128x128xbf16>, vector<16x128xf32> -> vector<16x128xf32>
    %31 = arith.addf %21, %30 : vector<16x128xf32>
    %32 = vector.broadcast %2 : vector<1x128xf32> to vector<16x128xf32>
    %33 = arith.addf %31, %32 : vector<16x128xf32>
    %cst_16 = arith.constant 0.000000e+00 : f32
    %34 = vector.broadcast %cst_16 : f32 to vector<16x128xf32>
    %35 = arith.maximumf %33, %34 : vector<16x128xf32>
    %36 = arith.truncf %35 : vector<16x128xf32> to vector<16x128xbf16>
    %c1_17 = arith.constant 1 : index
    %c0_18 = arith.constant 0 : index
    %c0_19 = arith.constant 0 : index
    %37 = vector.load %arg3[%c1_17, %c0_18, %c0_19] : memref<3x128x128xbf16, #tpu.memory_space<vmem>>, vector<1x128x128xbf16>
    %38 = vector.shape_cast %37 : vector<1x128x128xbf16> to vector<128x128xbf16>
    %cst_20 = arith.constant dense<0.000000e+00> : vector<16x128xf32>
    %39 = tpu.matmul %36, %38, %cst_20 {dimension_numbers = #tpu.dot_dimension_numbers<[1], [0], [0], [1], [0, 0, 1, 1], [], []>} : vector<16x128xbf16>, vector<128x128xbf16>, vector<16x128xf32> -> vector<16x128xf32>
    %c1_i32_21 = arith.constant 1 : i32
    %40 = tpu.dynamic_rotate %35 by %c1_i32_21 dim 0 : vector<16x128xf32>, i32 -> vector<16x128xf32>
    %cst_22 = arith.constant 0.000000e+00 : f32
    %41 = vector.shape_cast %5 : vector<16x1xi1> to vector<16x1xi1>
    %42 = vector.broadcast %41 : vector<16x1xi1> to vector<16x128xi1>
    %43 = vector.broadcast %cst_22 : f32 to vector<16x128xf32>
    %44 = arith.select %42, %40, %43 : vector<16x128xi1>, vector<16x128xf32>
    %45 = arith.truncf %44 : vector<16x128xf32> to vector<16x128xbf16>
    %c0_23 = arith.constant 0 : index
    %c0_24 = arith.constant 0 : index
    %c0_25 = arith.constant 0 : index
    %46 = vector.load %arg3[%c0_23, %c0_24, %c0_25] : memref<3x128x128xbf16, #tpu.memory_space<vmem>>, vector<1x128x128xbf16>
    %47 = vector.shape_cast %46 : vector<1x128x128xbf16> to vector<128x128xbf16>
    %cst_26 = arith.constant dense<0.000000e+00> : vector<16x128xf32>
    %48 = tpu.matmul %45, %47, %cst_26 {dimension_numbers = #tpu.dot_dimension_numbers<[1], [0], [0], [1], [0, 0, 1, 1], [], []>} : vector<16x128xbf16>, vector<128x128xbf16>, vector<16x128xf32> -> vector<16x128xf32>
    %49 = arith.addf %39, %48 : vector<16x128xf32>
    %c15_i32_27 = arith.constant 15 : i32
    %50 = tpu.dynamic_rotate %35 by %c15_i32_27 dim 0 : vector<16x128xf32>, i32 -> vector<16x128xf32>
    %cst_28 = arith.constant 0.000000e+00 : f32
    %51 = vector.shape_cast %7 : vector<16x1xi1> to vector<16x1xi1>
    %52 = vector.broadcast %51 : vector<16x1xi1> to vector<16x128xi1>
    %53 = vector.broadcast %cst_28 : f32 to vector<16x128xf32>
    %54 = arith.select %52, %50, %53 : vector<16x128xi1>, vector<16x128xf32>
    %55 = arith.truncf %54 : vector<16x128xf32> to vector<16x128xbf16>
    %c2_29 = arith.constant 2 : index
    %c0_30 = arith.constant 0 : index
    %c0_31 = arith.constant 0 : index
    %56 = vector.load %arg3[%c2_29, %c0_30, %c0_31] : memref<3x128x128xbf16, #tpu.memory_space<vmem>>, vector<1x128x128xbf16>
    %57 = vector.shape_cast %56 : vector<1x128x128xbf16> to vector<128x128xbf16>
    %cst_32 = arith.constant dense<0.000000e+00> : vector<16x128xf32>
    %58 = tpu.matmul %55, %57, %cst_32 {dimension_numbers = #tpu.dot_dimension_numbers<[1], [0], [0], [1], [0, 0, 1, 1], [], []>} : vector<16x128xbf16>, vector<128x128xbf16>, vector<16x128xf32> -> vector<16x128xf32>
    %59 = arith.addf %49, %58 : vector<16x128xf32>
    %60 = vector.broadcast %2 : vector<1x128xf32> to vector<16x128xf32>
    %61 = arith.addf %59, %60 : vector<16x128xf32>
    %62 = arith.addf %61, %1 : vector<16x128xf32>
    %cst_33 = arith.constant 0.000000e+00 : f32
    %63 = vector.broadcast %cst_33 : f32 to vector<16x128xf32>
    %64 = arith.maximumf %62, %63 : vector<16x128xf32>
    %65 = arith.truncf %64 : vector<16x128xf32> to vector<16x128xbf16>
    %c0_34 = arith.constant 0 : index
    %c0_35 = arith.constant 0 : index
    %c0_36 = arith.constant 0 : index
    %66 = vector.load %arg5[%c0_34, %c0_35, %c0_36] : memref<1x16x128xbf16, #tpu.memory_space<vmem>>, vector<1x16x128xbf16>
    %67 = vector.shape_cast %66 : vector<1x16x128xbf16> to vector<16x128xbf16>
    %68 = vector.shape_cast %65 : vector<16x128xbf16> to vector<1x16x128xbf16>
    tpu.vector_store %arg5[%c0_34, %c0_35, %c0_36], %68 {strides = array<i32>} : memref<1x16x128xbf16, #tpu.memory_space<vmem>>, vector<1x16x128xbf16>,
    return
  }
  func.func @transform_0(%arg0: i32) -> (i32, i32, i32) {
    %c0_i32 = arith.constant 0 : i32
    %c0_i32_0 = arith.constant 0 : i32
    %c0_i32_1 = arith.constant 0 : i32
    return %arg0, %c0_i32, %c0_i32_0 : i32, i32, i32
  }
  func.func @transform_1(%arg0: i32) -> (i32, i32, i32) {
    %c0_i32 = arith.constant 0 : i32
    %c0_i32_0 = arith.constant 0 : i32
    %c0_i32_1 = arith.constant 0 : i32
    %c0_i32_2 = arith.constant 0 : i32
    return %c0_i32, %c0_i32_0, %c0_i32_1 : i32, i32, i32
  }
  func.func @transform_2(%arg0: i32) -> (i32, i32, i32) {
    %c0_i32 = arith.constant 0 : i32
    %c0_i32_0 = arith.constant 0 : i32
    %c0_i32_1 = arith.constant 0 : i32
    %c0_i32_2 = arith.constant 0 : i32
    return %c0_i32, %c0_i32_0, %c0_i32_1 : i32, i32, i32
  }
  func.func @transform_3(%arg0: i32) -> (i32, i32) {
    %c0_i32 = arith.constant 0 : i32
    %c0_i32_0 = arith.constant 0 : i32
    %c0_i32_1 = arith.constant 0 : i32
    return %c0_i32, %c0_i32_0 : i32, i32
  }
  func.func @transform_4(%arg0: i32) -> (i32, i32, i32) {
    %c0_i32 = arith.constant 0 : i32
    %c0_i32_0 = arith.constant 0 : i32
    %c0_i32_1 = arith.constant 0 : i32
    return %arg0, %c0_i32, %c0_i32_0 : i32, i32, i32
  }
}

</mosaic_0001>

<llo_original>
// kernel: resnet_block_forward.1
$region0: #{resnet_block_forward.1}
  #allocation0 [shape = 'u32[]', space=smem, size = 0x4, offset = 0x4, fixed_abs, tag = 'smem constant byte address 0x4 - core index']
  #allocation1 [shape = 'u32[144,128]{1,0:T(1,128)}', space=vmem, size = 0x12000, scoped, tag = 'internal scratch']
  %s0 = inlined_call_operand.vmem [shape: f32[1,16,128], index: 0, kind: input, shape index: {}]
  %s1 = inlined_call_operand.vmem [shape: bf16[3,128,128], index: 1, kind: input, shape index: {}]
  %s2 = inlined_call_operand.vmem [shape: bf16[3,128,128], index: 2, kind: input, shape index: {}]
  %s3 = inlined_call_operand.vmem [shape: f32[1,128], index: 3, kind: input, shape index: {}]
  %s4 = inlined_call_operand.vmem [shape: bf16[1,16,128], index: 4, kind: output, shape index: {}]
  %s5 = sld [smem:[#allocation0]]
  $region26: #{resnet_block_forward.1} parent=0
    _
  %s7 = ssub.s32 1, %s5
  %s8 = scalar_select 0, %s7, %s5
  // Predicated region
  $region2: #{resnet_block_forward.1} parent=0 // pred_check
    _
  $region3: #{resnet_block_forward.1} parent=0 // pred_check_branch
    %10 = sbr.rel (0) target = $region5
  $region4: #{resnet_block_forward.1} parent=0 // pred_region
    _
  $region5: #{resnet_block_forward.1} parent=0 // pred_fallthru
    _
  // Predicated region
  $region6: #{resnet_block_forward.1} parent=0 // pred_check
    _
  $region7: #{resnet_block_forward.1} parent=0 // pred_check_branch
    %12 = sbr.rel (0) target = $region9
  $region8: #{resnet_block_forward.1} parent=0 // pred_region
    _
  $region9: #{resnet_block_forward.1} parent=0 // pred_fallthru
    _
  // Predicated region
  $region10: #{resnet_block_forward.1} parent=0 // pred_check
    _
  $region11: #{resnet_block_forward.1} parent=0 // pred_check_branch
    %14 = sbr.rel (0) target = $region13
  $region12: #{resnet_block_forward.1} parent=0 // pred_region
    _
  $region13: #{resnet_block_forward.1} parent=0 // pred_fallthru
    _
  // Predicated region
  $region14: #{resnet_block_forward.1} parent=0 // pred_check
    _
  $region15: #{resnet_block_forward.1} parent=0 // pred_check_branch
    %16 = sbr.rel (0) target = $region17
  $region16: #{resnet_block_forward.1} parent=0 // pred_region
    _
  $region17: #{resnet_block_forward.1} parent=0 // pred_fallthru
    _
  %v18 = vld [vmem:[%s0] sm:$0xff]
  %v19 = vld [vmem:[%s0 + $0x8] sm:$0xff]
  %v20 = vld [vmem:[%s3] sm:$0x1]
  %v21 = vlaneseq
  %v22 = vshrl.u32 %v21, 7
  %v23 = vadd.s32 %v22, 8
  %vm24 = vcmp.gt.s32.totalorder %v22, 0
  %vm25 = vcmp.gt.s32.totalorder %v23, 0
  %vm26 = vcmp.lt.s32.totalorder %v22, 15
  %vm27 = vcmp.lt.s32.totalorder %v23, 15
  %v28 = vpack.c.bf16 %v19, %v18
  %s29 = scalar_lea.vmem %s1, 64
  %v30 = vld [vmem:[%s29] sm:$0xf]
  %v31 = vld [vmem:[%s29 + $0x4] sm:$0xf]
  %v32 = vld [vmem:[%s29 + $0x8] sm:$0xf]
  %v33 = vld [vmem:[%s29 + $0xc] sm:$0xf]
  %v34 = vld [vmem:[%s29 + $0x10] sm:$0xf]
  %v35 = vld [vmem:[%s29 + $0x14] sm:$0xf]
  %v36 = vld [vmem:[%s29 + $0x18] sm:$0xf]
  %v37 = vld [vmem:[%s29 + $0x1c] sm:$0xf]
  %v38 = vld [vmem:[%s29 + $0x20] sm:$0xf]
  %v39 = vld [vmem:[%s29 + $0x24] sm:$0xf]
  %v40 = vld [vmem:[%s29 + $0x28] sm:$0xf]
  %v41 = vld [vmem:[%s29 + $0x2c] sm:$0xf]
  %v42 = vld [vmem:[%s29 + $0x30] sm:$0xf]
  %v43 = vld [vmem:[%s29 + $0x34] sm:$0xf]
  %v44 = vld [vmem:[%s29 + $0x38] sm:$0xf]
  %v45 = vld [vmem:[%s29 + $0x3c] sm:$0xf]
  %v46 = vrot.slane %v18, 7
  %v47 = vrot.slane %v19, 7
  %vm48 = vcmp.lt.s32.totalorder %v22, 1
  %v49 = vsel %vm48, %v46, %v47
  %v50 = vsel %vm48, %v47, %v46
  %v51 = vsel %vm24, 1, 0
  %v52 = vsel %vm25, 1, 0
  %vm53 = vcmp.eq.s32.totalorder %v51, 1
  %vm54 = vcmp.eq.s32.totalorder %v52, 1
  %v55 = vsel %vm53, %v50, 0.0
  %v56 = vsel %vm54, %v49, 0.0
  %v57 = vpack.c.bf16 %v56, %v55
  %v58 = vld [vmem:[%s1] sm:$0xf]
  %v59 = vld [vmem:[%s1 + $0x4] sm:$0xf]
  %v60 = vld [vmem:[%s1 + $0x8] sm:$0xf]
  %v61 = vld [vmem:[%s1 + $0xc] sm:$0xf]
  %v62 = vld [vmem:[%s1 + $0x10] sm:$0xf]
  %v63 = vld [vmem:[%s1 + $0x14] sm:$0xf]
  %v64 = vld [vmem:[%s1 + $0x18] sm:$0xf]
  %v65 = vld [vmem:[%s1 + $0x1c] sm:$0xf]
  %v66 = vld [vmem:[%s1 + $0x20] sm:$0xf]
  %v67 = vld [vmem:[%s1 + $0x24] sm:$0xf]
  %v68 = vld [vmem:[%s1 + $0x28] sm:$0xf]
  %v69 = vld [vmem:[%s1 + $0x2c] sm:$0xf]
  %v70 = vld [vmem:[%s1 + $0x30] sm:$0xf]
  %v71 = vld [vmem:[%s1 + $0x34] sm:$0xf]
  %v72 = vld [vmem:[%s1 + $0x38] sm:$0xf]
  %v73 = vld [vmem:[%s1 + $0x3c] sm:$0xf]
  %v90 = vunpack.c.l.b16 %v58
  %v91 = vunpack.c.l.b16 %v59
  %v92 = vunpack.c.l.b16 %v60
  %v93 = vunpack.c.l.b16 %v61
  %v94 = vunpack.c.l.b16 %v62
  %v95 = vunpack.c.l.b16 %v63
  %v96 = vunpack.c.l.b16 %v64
  %v97 = vunpack.c.l.b16 %v65
  %v98 = vunpack.c.l.b16 %v66
  %v99 = vunpack.c.l.b16 %v67
  %v100 = vunpack.c.l.b16 %v68
  %v101 = vunpack.c.l.b16 %v69
  %v102 = vunpack.c.l.b16 %v70
  %v103 = vunpack.c.l.b16 %v71
  %v104 = vunpack.c.l.b16 %v72
  %v105 = vunpack.c.l.b16 %v73
  %v106 = vpack.c.b16 %v91, %v90
  %v107 = vpack.c.b16 %v93, %v92
  %v108 = vpack.c.b16 %v95, %v94
  %v109 = vpack.c.b16 %v97, %v96
  %v110 = vpack.c.b16 %v99, %v98
  %v111 = vpack.c.b16 %v101, %v100
  %v112 = vpack.c.b16 %v103, %v102
  %v113 = vpack.c.b16 %v105, %v104
  %122 = vmatprep.subr.bf16.mxu0 0
  %123 = vmatpush1.bf16.msra.mxu0 %v106
  %124 = vmatprep.subr.bf16.mxu0 0
  %125 = vmatpush1.bf16.msra.mxu0 %v107
  %126 = vmatprep.subr.bf16.mxu0 0
  %127 = vmatpush1.bf16.msra.mxu0 %v108
  %128 = vmatprep.subr.bf16.mxu0 0
  %129 = vmatpush1.bf16.msra.mxu0 %v109
  %130 = vmatprep.subr.bf16.mxu0 0
  %131 = vmatpush1.bf16.msra.mxu0 %v110
  %132 = vmatprep.subr.bf16.mxu0 0
  %133 = vmatpush1.bf16.msra.mxu0 %v111
  %134 = vmatprep.subr.bf16.mxu0 0
  %135 = vmatpush1.bf16.msra.mxu0 %v112
  %136 = vmatprep.subr.bf16.mxu0 0
  %137 = vmatpush1.bf16.msra.mxu0 %v113
  %138 = vmatprep.subr.bf16.mxu0 0
  %139 = vmatpush1.bf16.msra.mxu0 0
  %140 = vmatprep.subr.bf16.mxu0 0
  %141 = vmatpush1.bf16.msra.mxu0 0
  %142 = vmatprep.subr.bf16.mxu0 0
  %143 = vmatpush1.bf16.msra.mxu0 0
  %144 = vmatprep.subr.bf16.mxu0 0
  %145 = vmatpush1.bf16.msra.mxu0 0
  %146 = vmatprep.subr.bf16.mxu0 0
  %147 = vmatpush1.bf16.msra.mxu0 0
  %148 = vmatprep.subr.bf16.mxu0 0
  %149 = vmatpush1.bf16.msra.mxu0 0
  %150 = vmatprep.subr.bf16.mxu0 0
  %151 = vmatpush1.bf16.msra.mxu0 0
  %152 = vmatprep.subr.bf16.mxu0 0
  %153 = vmatpush1.bf16.msra.mxu0 0
  %154 = vmatprep.mubr.bf16.mxu0 0
  %155 = vmatmul.mubr.bf16.gmra.mrb[0].mxu0 %v57
  %v156 = vpop.f32.mrb[0].mxu0
  %v157 = vadd.f32 0.0, %v156
  %v158 = vpop.f32.mrb[0].mxu0
  %v159 = vpop.f32.mrb[0].mxu0
  %v160 = vadd.f32 0.0, %v159
  %v161 = vpop.f32.mrb[0].mxu0
  %162 = vdwg.mxu0
  %v179 = vunpack.c.l.b16 %v30
  %v180 = vunpack.c.l.b16 %v31
  %v181 = vunpack.c.l.b16 %v32
  %v182 = vunpack.c.l.b16 %v33
  %v183 = vunpack.c.l.b16 %v34
  %v184 = vunpack.c.l.b16 %v35
  %v185 = vunpack.c.l.b16 %v36
  %v186 = vunpack.c.l.b16 %v37
  %v187 = vunpack.c.l.b16 %v38
  %v188 = vunpack.c.l.b16 %v39
  %v189 = vunpack.c.l.b16 %v40
  %v190 = vunpack.c.l.b16 %v41
  %v191 = vunpack.c.l.b16 %v42
  %v192 = vunpack.c.l.b16 %v43
  %v193 = vunpack.c.l.b16 %v44
  %v194 = vunpack.c.l.b16 %v45
  %v195 = vpack.c.b16 %v180, %v179
  %v196 = vpack.c.b16 %v182, %v181
  %v197 = vpack.c.b16 %v184, %v183
  %v198 = vpack.c.b16 %v186, %v185
  %v199 = vpack.c.b16 %v188, %v187
  %v200 = vpack.c.b16 %v190, %v189
  %v201 = vpack.c.b16 %v192, %v191
  %v202 = vpack.c.b16 %v194, %v193
  %211 = vmatprep.subr.bf16.mxu0 0
  %212 = vmatpush1.bf16.msra.mxu0 %v195
  %213 = vmatprep.subr.bf16.mxu0 0
  %214 = vmatpush1.bf16.msra.mxu0 %v196
  %215 = vmatprep.subr.bf16.mxu0 0
  %216 = vmatpush1.bf16.msra.mxu0 %v197
  %217 = vmatprep.subr.bf16.mxu0 0
  %218 = vmatpush1.bf16.msra.mxu0 %v198
  %219 = vmatprep.subr.bf16.mxu0 0
  %220 = vmatpush1.bf16.msra.mxu0 %v199
  %221 = vmatprep.subr.bf16.mxu0 0
  %222 = vmatpush1.bf16.msra.mxu0 %v200
  %223 = vmatprep.subr.bf16.mxu0 0
  %224 = vmatpush1.bf16.msra.mxu0 %v201
  %225 = vmatprep.subr.bf16.mxu0 0
  %226 = vmatpush1.bf16.msra.mxu0 %v202
  %227 = vmatprep.subr.bf16.mxu0 0
  %228 = vmatpush1.bf16.msra.mxu0 0
  %229 = vmatprep.subr.bf16.mxu0 0
  %230 = vmatpush1.bf16.msra.mxu0 0
  %231 = vmatprep.subr.bf16.mxu0 0
  %232 = vmatpush1.bf16.msra.mxu0 0
  %233 = vmatprep.subr.bf16.mxu0 0
  %234 = vmatpush1.bf16.msra.mxu0 0
  %235 = vmatprep.subr.bf16.mxu0 0
  %236 = vmatpush1.bf16.msra.mxu0 0
  %237 = vmatprep.subr.bf16.mxu0 0
  %238 = vmatpush1.bf16.msra.mxu0 0
  %239 = vmatprep.subr.bf16.mxu0 0
  %240 = vmatpush1.bf16.msra.mxu0 0
  %241 = vmatprep.subr.bf16.mxu0 0
  %242 = vmatpush1.bf16.msra.mxu0 0
  %243 = vmatprep.mubr.bf16.mxu0 0
  %244 = vmatmul.mubr.bf16.gmra.mrb[0].mxu0 %v28
  %v245 = vpop.f32.mrb[0].mxu0
  %v246 = vadd.f32 %v157, %v245
  %v247 = vpop.f32.mrb[0].mxu0
  %v248 = vpop.f32.mrb[0].mxu0
  %v249 = vadd.f32 %v160, %v248
  %v250 = vpop.f32.mrb[0].mxu0
  %251 = vdwg.mxu0
  %v252 = vrot.slane %v18, 1
  %v253 = vrot.slane %v19, 1
  %vm254 = vcmp.lt.s32.totalorder %v22, 7
  %v255 = vsel %vm254, %v252, %v253
  %v256 = vsel %vm254, %v253, %v252
  %v257 = vsel %vm26, 1, 0
  %v258 = vsel %vm27, 1, 0
  %vm259 = vcmp.eq.s32.totalorder %v257, 1
  %vm260 = vcmp.eq.s32.totalorder %v258, 1
  %v261 = vsel %vm259, %v255, 0.0
  %v262 = vsel %vm260, %v256, 0.0
  %v263 = vpack.c.bf16 %v262, %v261
  %s264 = scalar_lea.vmem %s1, 128
  %v265 = vld [vmem:[%s264] sm:$0xf]
  %v266 = vld [vmem:[%s264 + $0x4] sm:$0xf]
  %v267 = vld [vmem:[%s264 + $0x8] sm:$0xf]
  %v268 = vld [vmem:[%s264 + $0xc] sm:$0xf]
  %v269 = vld [vmem:[%s264 + $0x10] sm:$0xf]
  %v270 = vld [vmem:[%s264 + $0x14] sm:$0xf]
  %v271 = vld [vmem:[%s264 + $0x18] sm:$0xf]
  %v272 = vld [vmem:[%s264 + $0x1c] sm:$0xf]
  %v273 = vld [vmem:[%s264 + $0x20] sm:$0xf]
  %v274 = vld [vmem:[%s264 + $0x24] sm:$0xf]
  %v275 = vld [vmem:[%s264 + $0x28] sm:$0xf]
  %v276 = vld [vmem:[%s264 + $0x2c] sm:$0xf]
  %v277 = vld [vmem:[%s264 + $0x30] sm:$0xf]
  %v278 = vld [vmem:[%s264 + $0x34] sm:$0xf]
  %v279 = vld [vmem:[%s264 + $0x38] sm:$0xf]
  %v280 = vld [vmem:[%s264 + $0x3c] sm:$0xf]
  %v297 = vunpack.c.l.b16 %v265
  %v298 = vunpack.c.l.b16 %v266
  %v299 = vunpack.c.l.b16 %v267
  %v300 = vunpack.c.l.b16 %v268
  %v301 = vunpack.c.l.b16 %v269
  %v302 = vunpack.c.l.b16 %v270
  %v303 = vunpack.c.l.b16 %v271
  %v304 = vunpack.c.l.b16 %v272
  %v305 = vunpack.c.l.b16 %v273
  %v306 = vunpack.c.l.b16 %v274
  %v307 = vunpack.c.l.b16 %v275
  %v308 = vunpack.c.l.b16 %v276
  %v309 = vunpack.c.l.b16 %v277
  %v310 = vunpack.c.l.b16 %v278
  %v311 = vunpack.c.l.b16 %v279
  %v312 = vunpack.c.l.b16 %v280
  %v313 = vpack.c.b16 %v298, %v297
  %v314 = vpack.c.b16 %v300, %v299
  %v315 = vpack.c.b16 %v302, %v301
  %v316 = vpack.c.b16 %v304, %v303
  %v317 = vpack.c.b16 %v306, %v305
  %v318 = vpack.c.b16 %v308, %v307
  %v319 = vpack.c.b16 %v310, %v309
  %v320 = vpack.c.b16 %v312, %v311
  %329 = vmatprep.subr.bf16.mxu0 0
  %330 = vmatpush1.bf16.msra.mxu0 %v313
  %331 = vmatprep.subr.bf16.mxu0 0
  %332 = vmatpush1.bf16.msra.mxu0 %v314
  %333 = vmatprep.subr.bf16.mxu0 0
  %334 = vmatpush1.bf16.msra.mxu0 %v315
  %335 = vmatprep.subr.bf16.mxu0 0
  %336 = vmatpush1.bf16.msra.mxu0 %v316
  %337 = vmatprep.subr.bf16.mxu0 0
  %338 = vmatpush1.bf16.msra.mxu0 %v317
  %339 = vmatprep.subr.bf16.mxu0 0
  %340 = vmatpush1.bf16.msra.mxu0 %v318
  %341 = vmatprep.subr.bf16.mxu0 0
  %342 = vmatpush1.bf16.msra.mxu0 %v319
  %343 = vmatprep.subr.bf16.mxu0 0
  %344 = vmatpush1.bf16.msra.mxu0 %v320
  %345 = vmatprep.subr.bf16.mxu0 0
  %346 = vmatpush1.bf16.msra.mxu0 0
  %347 = vmatprep.subr.bf16.mxu0 0
  %348 = vmatpush1.bf16.msra.mxu0 0
  %349 = vmatprep.subr.bf16.mxu0 0
  %350 = vmatpush1.bf16.msra.mxu0 0
  %351 = vmatprep.subr.bf16.mxu0 0
  %352 = vmatpush1.bf16.msra.mxu0 0
  %353 = vmatprep.subr.bf16.mxu0 0
  %354 = vmatpush1.bf16.msra.mxu0 0
  %355 = vmatprep.subr.bf16.mxu0 0
  %356 = vmatpush1.bf16.msra.mxu0 0
  %357 = vmatprep.subr.bf16.mxu0 0
  %358 = vmatpush1.bf16.msra.mxu0 0
  %359 = vmatprep.subr.bf16.mxu0 0
  %360 = vmatpush1.bf16.msra.mxu0 0
  %361 = vmatprep.mubr.bf16.mxu0 0
  %362 = vmatmul.mubr.bf16.gmra.mrb[0].mxu0 %v263
  %v363 = vpop.f32.mrb[0].mxu0
  %v364 = vadd.f32 0.0, %v363
  %v365 = vpop.f32.mrb[0].mxu0
  %v366 = vpop.f32.mrb[0].mxu0
  %v367 = vadd.f32 0.0, %v366
  %v368 = vpop.f32.mrb[0].mxu0
  %369 = vdwg.mxu0
  %v370 = vadd.f32 %v246, %v364
  %v371 = vadd.f32 %v249, %v367
  %v373 = vlaneseq
  %v374 = vshrl.u32 %v373, 7
  %v375 = vsub.s32 0, %v374
  %v376 = vrot.slane %v20, %v375
  %v378 = vadd.f32 %v370, %v376
  %v379 = vadd.f32 %v371, %v376
  %v380 = vmax.f32 %v378, 0.0
  %v381 = vmax.f32 %v379, 0.0
  %v382 = vpack.c.bf16 %v381, %v380
  %s383 = scalar_lea.vmem %s2, 64
  %v384 = vld [vmem:[%s383] sm:$0xf]
  %v385 = vld [vmem:[%s383 + $0x4] sm:$0xf]
  %v386 = vld [vmem:[%s383 + $0x8] sm:$0xf]
  %v387 = vld [vmem:[%s383 + $0xc] sm:$0xf]
  %v388 = vld [vmem:[%s383 + $0x10] sm:$0xf]
  %v389 = vld [vmem:[%s383 + $0x14] sm:$0xf]
  %v390 = vld [vmem:[%s383 + $0x18] sm:$0xf]
  %v391 = vld [vmem:[%s383 + $0x1c] sm:$0xf]
  %v392 = vld [vmem:[%s383 + $0x20] sm:$0xf]
  %v393 = vld [vmem:[%s383 + $0x24] sm:$0xf]
  %v394 = vld [vmem:[%s383 + $0x28] sm:$0xf]
  %v395 = vld [vmem:[%s383 + $0x2c] sm:$0xf]
  %v396 = vld [vmem:[%s383 + $0x30] sm:$0xf]
  %v397 = vld [vmem:[%s383 + $0x34] sm:$0xf]
  %v398 = vld [vmem:[%s383 + $0x38] sm:$0xf]
  %v399 = vld [vmem:[%s383 + $0x3c] sm:$0xf]
  %v400 = vrot.slane %v380, 7
  %v401 = vrot.slane %v381, 7
  %v402 = vsel %vm48, %v400, %v401
  %v403 = vsel %vm48, %v401, %v400
  %v404 = vsel %vm53, %v403, 0.0
  %v405 = vsel %vm54, %v402, 0.0
  %v406 = vpack.c.bf16 %v405, %v404
  %v407 = vld [vmem:[%s2] sm:$0xf]
  %v408 = vld [vmem:[%s2 + $0x4] sm:$0xf]
  %v409 = vld [vmem:[%s2 + $0x8] sm:$0xf]
  %v410 = vld [vmem:[%s2 + $0xc] sm:$0xf]
  %v411 = vld [vmem:[%s2 + $0x10] sm:$0xf]
  %v412 = vld [vmem:[%s2 + $0x14] sm:$0xf]
  %v413 = vld [vmem:[%s2 + $0x18] sm:$0xf]
  %v414 = vld [vmem:[%s2 + $0x1c] sm:$0xf]
  %v415 = vld [vmem:[%s2 + $0x20] sm:$0xf]
  %v416 = vld [vmem:[%s2 + $0x24] sm:$0xf]
  %v417 = vld [vmem:[%s2 + $0x28] sm:$0xf]
  %v418 = vld [vmem:[%s2 + $0x2c] sm:$0xf]
  %v419 = vld [vmem:[%s2 + $0x30] sm:$0xf]
  %v420 = vld [vmem:[%s2 + $0x34] sm:$0xf]
  %v421 = vld [vmem:[%s2 + $0x38] sm:$0xf]
  %v422 = vld [vmem:[%s2 + $0x3c] sm:$0xf]
  %v439 = vunpack.c.l.b16 %v407
  %v440 = vunpack.c.l.b16 %v408
  %v441 = vunpack.c.l.b16 %v409
  %v442 = vunpack.c.l.b16 %v410
  %v443 = vunpack.c.l.b16 %v411
  %v444 = vunpack.c.l.b16 %v412
  %v445 = vunpack.c.l.b16 %v413
  %v446 = vunpack.c.l.b16 %v414
  %v447 = vunpack.c.l.b16 %v415
  %v448 = vunpack.c.l.b16 %v416
  %v449 = vunpack.c.l.b16 %v417
  %v450 = vunpack.c.l.b16 %v418
  %v451 = vunpack.c.l.b16 %v419
  %v452 = vunpack.c.l.b16 %v420
  %v453 = vunpack.c.l.b16 %v421
  %v454 = vunpack.c.l.b16 %v422
  %v455 = vpack.c.b16 %v440, %v439
  %v456 = vpack.c.b16 %v442, %v441
  %v457 = vpack.c.b16 %v444, %v443
  %v458 = vpack.c.b16 %v446, %v445
  %v459 = vpack.c.b16 %v448, %v447
  %v460 = vpack.c.b16 %v450, %v449
  %v461 = vpack.c.b16 %v452, %v451
  %v462 = vpack.c.b16 %v454, %v453
  %471 = vmatprep.subr.bf16.mxu0 0
  %472 = vmatpush1.bf16.msra.mxu0 %v455
  %473 = vmatprep.subr.bf16.mxu0 0
  %474 = vmatpush1.bf16.msra.mxu0 %v456
  %475 = vmatprep.subr.bf16.mxu0 0
  %476 = vmatpush1.bf16.msra.mxu0 %v457
  %477 = vmatprep.subr.bf16.mxu0 0
  %478 = vmatpush1.bf16.msra.mxu0 %v458
  %479 = vmatprep.subr.bf16.mxu0 0
  %480 = vmatpush1.bf16.msra.mxu0 %v459
  %481 = vmatprep.subr.bf16.mxu0 0
  %482 = vmatpush1.bf16.msra.mxu0 %v460
  %483 = vmatprep.subr.bf16.mxu0 0
  %484 = vmatpush1.bf16.msra.mxu0 %v461
  %485 = vmatprep.subr.bf16.mxu0 0
  %486 = vmatpush1.bf16.msra.mxu0 %v462
  %487 = vmatprep.subr.bf16.mxu0 0
  %488 = vmatpush1.bf16.msra.mxu0 0
  %489 = vmatprep.subr.bf16.mxu0 0
  %490 = vmatpush1.bf16.msra.mxu0 0
  %491 = vmatprep.subr.bf16.mxu0 0
  %492 = vmatpush1.bf16.msra.mxu0 0
  %493 = vmatprep.subr.bf16.mxu0 0
  %494 = vmatpush1.bf16.msra.mxu0 0
  %495 = vmatprep.subr.bf16.mxu0 0
  %496 = vmatpush1.bf16.msra.mxu0 0
  %497 = vmatprep.subr.bf16.mxu0 0
  %498 = vmatpush1.bf16.msra.mxu0 0
  %499 = vmatprep.subr.bf16.mxu0 0
  %500 = vmatpush1.bf16.msra.mxu0 0
  %501 = vmatprep.subr.bf16.mxu0 0
  %502 = vmatpush1.bf16.msra.mxu0 0
  %503 = vmatprep.mubr.bf16.mxu0 0
  %504 = vmatmul.mubr.bf16.gmra.mrb[0].mxu0 %v406
  %v505 = vpop.f32.mrb[0].mxu0
  %v506 = vadd.f32 0.0, %v505
  %v507 = vpop.f32.mrb[0].mxu0
  %v508 = vpop.f32.mrb[0].mxu0
  %v509 = vadd.f32 0.0, %v508
  %v510 = vpop.f32.mrb[0].mxu0
  %511 = vdwg.mxu0
  %v528 = vunpack.c.l.b16 %v384
  %v529 = vunpack.c.l.b16 %v385
  %v530 = vunpack.c.l.b16 %v386
  %v531 = vunpack.c.l.b16 %v387
  %v532 = vunpack.c.l.b16 %v388
  %v533 = vunpack.c.l.b16 %v389
  %v534 = vunpack.c.l.b16 %v390
  %v535 = vunpack.c.l.b16 %v391
  %v536 = vunpack.c.l.b16 %v392
  %v537 = vunpack.c.l.b16 %v393
  %v538 = vunpack.c.l.b16 %v394
  %v539 = vunpack.c.l.b16 %v395
  %v540 = vunpack.c.l.b16 %v396
  %v541 = vunpack.c.l.b16 %v397
  %v542 = vunpack.c.l.b16 %v398
  %v543 = vunpack.c.l.b16 %v399
  %v544 = vpack.c.b16 %v529, %v528
  %v545 = vpack.c.b16 %v531, %v530
  %v546 = vpack.c.b16 %v533, %v532
  %v547 = vpack.c.b16 %v535, %v534
  %v548 = vpack.c.b16 %v537, %v536
  %v549 = vpack.c.b16 %v539, %v538
  %v550 = vpack.c.b16 %v541, %v540
  %v551 = vpack.c.b16 %v543, %v542
  %560 = vmatprep.subr.bf16.mxu0 0
  %561 = vmatpush1.bf16.msra.mxu0 %v544
  %562 = vmatprep.subr.bf16.mxu0 0
  %563 = vmatpush1.bf16.msra.mxu0 %v545
  %564 = vmatprep.subr.bf16.mxu0 0
  %565 = vmatpush1.bf16.msra.mxu0 %v546
  %566 = vmatprep.subr.bf16.mxu0 0
  %567 = vmatpush1.bf16.msra.mxu0 %v547
  %568 = vmatprep.subr.bf16.mxu0 0
  %569 = vmatpush1.bf16.msra.mxu0 %v548
  %570 = vmatprep.subr.bf16.mxu0 0
  %571 = vmatpush1.bf16.msra.mxu0 %v549
  %572 = vmatprep.subr.bf16.mxu0 0
  %573 = vmatpush1.bf16.msra.mxu0 %v550
  %574 = vmatprep.subr.bf16.mxu0 0
  %575 = vmatpush1.bf16.msra.mxu0 %v551
  %576 = vmatprep.subr.bf16.mxu0 0
  %577 = vmatpush1.bf16.msra.mxu0 0
  %578 = vmatprep.subr.bf16.mxu0 0
  %579 = vmatpush1.bf16.msra.mxu0 0
  %580 = vmatprep.subr.bf16.mxu0 0
  %581 = vmatpush1.bf16.msra.mxu0 0
  %582 = vmatprep.subr.bf16.mxu0 0
  %583 = vmatpush1.bf16.msra.mxu0 0
  %584 = vmatprep.subr.bf16.mxu0 0
  %585 = vmatpush1.bf16.msra.mxu0 0
  %586 = vmatprep.subr.bf16.mxu0 0
  %587 = vmatpush1.bf16.msra.mxu0 0
  %588 = vmatprep.subr.bf16.mxu0 0
  %589 = vmatpush1.bf16.msra.mxu0 0
  %590 = vmatprep.subr.bf16.mxu0 0
  %591 = vmatpush1.bf16.msra.mxu0 0
  %592 = vmatprep.mubr.bf16.mxu0 0
  %593 = vmatmul.mubr.bf16.gmra.mrb[0].mxu0 %v382
  %v594 = vpop.f32.mrb[0].mxu0
  %v595 = vadd.f32 %v506, %v594
  %v596 = vpop.f32.mrb[0].mxu0
  %v597 = vpop.f32.mrb[0].mxu0
  %v598 = vadd.f32 %v509, %v597
  %v599 = vpop.f32.mrb[0].mxu0
  %600 = vdwg.mxu0
  %v601 = vrot.slane %v380, 1
  %v602 = vrot.slane %v381, 1
  %v603 = vsel %vm254, %v601, %v602
  %v604 = vsel %vm254, %v602, %v601
  %v605 = vsel %vm259, %v603, 0.0
  %v606 = vsel %vm260, %v604, 0.0
  %v607 = vpack.c.bf16 %v606, %v605
  %s608 = scalar_lea.vmem %s2, 128
  %v609 = vld [vmem:[%s608] sm:$0xf]
  %v610 = vld [vmem:[%s608 + $0x4] sm:$0xf]
  %v611 = vld [vmem:[%s608 + $0x8] sm:$0xf]
  %v612 = vld [vmem:[%s608 + $0xc] sm:$0xf]
  %v613 = vld [vmem:[%s608 + $0x10] sm:$0xf]
  %v614 = vld [vmem:[%s608 + $0x14] sm:$0xf]
  %v615 = vld [vmem:[%s608 + $0x18] sm:$0xf]
  %v616 = vld [vmem:[%s608 + $0x1c] sm:$0xf]
  %v617 = vld [vmem:[%s608 + $0x20] sm:$0xf]
  %v618 = vld [vmem:[%s608 + $0x24] sm:$0xf]
  %v619 = vld [vmem:[%s608 + $0x28] sm:$0xf]
  %v620 = vld [vmem:[%s608 + $0x2c] sm:$0xf]
  %v621 = vld [vmem:[%s608 + $0x30] sm:$0xf]
  %v622 = vld [vmem:[%s608 + $0x34] sm:$0xf]
  %v623 = vld [vmem:[%s608 + $0x38] sm:$0xf]
  %v624 = vld [vmem:[%s608 + $0x3c] sm:$0xf]
  %v641 = vunpack.c.l.b16 %v609
  %v642 = vunpack.c.l.b16 %v610
  %v643 = vunpack.c.l.b16 %v611
  %v644 = vunpack.c.l.b16 %v612
  %v645 = vunpack.c.l.b16 %v613
  %v646 = vunpack.c.l.b16 %v614
  %v647 = vunpack.c.l.b16 %v615
  %v648 = vunpack.c.l.b16 %v616
  %v649 = vunpack.c.l.b16 %v617
  %v650 = vunpack.c.l.b16 %v618
  %v651 = vunpack.c.l.b16 %v619
  %v652 = vunpack.c.l.b16 %v620
  %v653 = vunpack.c.l.b16 %v621
  %v654 = vunpack.c.l.b16 %v622
  %v655 = vunpack.c.l.b16 %v623
  %v656 = vunpack.c.l.b16 %v624
  %v657 = vpack.c.b16 %v642, %v641
  %v658 = vpack.c.b16 %v644, %v643
  %v659 = vpack.c.b16 %v646, %v645
  %v660 = vpack.c.b16 %v648, %v647
  %v661 = vpack.c.b16 %v650, %v649
  %v662 = vpack.c.b16 %v652, %v651
  %v663 = vpack.c.b16 %v654, %v653
  %v664 = vpack.c.b16 %v656, %v655
  %673 = vmatprep.subr.bf16.mxu0 0
  %674 = vmatpush1.bf16.msra.mxu0 %v657
  %675 = vmatprep.subr.bf16.mxu0 0
  %676 = vmatpush1.bf16.msra.mxu0 %v658
  %677 = vmatprep.subr.bf16.mxu0 0
  %678 = vmatpush1.bf16.msra.mxu0 %v659
  %679 = vmatprep.subr.bf16.mxu0 0
  %680 = vmatpush1.bf16.msra.mxu0 %v660
  %681 = vmatprep.subr.bf16.mxu0 0
  %682 = vmatpush1.bf16.msra.mxu0 %v661
  %683 = vmatprep.subr.bf16.mxu0 0
  %684 = vmatpush1.bf16.msra.mxu0 %v662
  %685 = vmatprep.subr.bf16.mxu0 0
  %686 = vmatpush1.bf16.msra.mxu0 %v663
  %687 = vmatprep.subr.bf16.mxu0 0
  %688 = vmatpush1.bf16.msra.mxu0 %v664
  %689 = vmatprep.subr.bf16.mxu0 0
  %690 = vmatpush1.bf16.msra.mxu0 0
  %691 = vmatprep.subr.bf16.mxu0 0
  %692 = vmatpush1.bf16.msra.mxu0 0
  %693 = vmatprep.subr.bf16.mxu0 0
  %694 = vmatpush1.bf16.msra.mxu0 0
  %695 = vmatprep.subr.bf16.mxu0 0
  %696 = vmatpush1.bf16.msra.mxu0 0
  %697 = vmatprep.subr.bf16.mxu0 0
  %698 = vmatpush1.bf16.msra.mxu0 0
  %699 = vmatprep.subr.bf16.mxu0 0
  %700 = vmatpush1.bf16.msra.mxu0 0
  %701 = vmatprep.subr.bf16.mxu0 0
  %702 = vmatpush1.bf16.msra.mxu0 0
  %703 = vmatprep.subr.bf16.mxu0 0
  %704 = vmatpush1.bf16.msra.mxu0 0
  %705 = vmatprep.mubr.bf16.mxu0 0
  %706 = vmatmul.mubr.bf16.gmra.mrb[0].mxu0 %v607
  %v707 = vpop.f32.mrb[0].mxu0
  %v708 = vadd.f32 0.0, %v707
  %v709 = vpop.f32.mrb[0].mxu0
  %v710 = vpop.f32.mrb[0].mxu0
  %v711 = vadd.f32 0.0, %v710
  %v712 = vpop.f32.mrb[0].mxu0
  %713 = vdwg.mxu0
  %v714 = vadd.f32 %v595, %v708
  %v715 = vadd.f32 %v598, %v711
  %v716 = vadd.f32 %v714, %v376
  %v717 = vadd.f32 %v715, %v376
  %v718 = vadd.f32 %v716, %v18
  %v719 = vadd.f32 %v717, %v19
  %v720 = vmax.f32 %v718, 0.0
  %v721 = vmax.f32 %v719, 0.0
  %v722 = vpack.c.bf16 %v721, %v720
  %v724 = vunpack.c.l.b16 %v722
  %v725 = vunpack.c.h.b16 %v722
  %v726 = vpack.c.b16 %v724, %v724
  %v727 = vpack.c.b16 %v725, %v725
  %730 = vst [vmem:[%s4] sm:$0xf] %v726
  %731 = vst [vmem:[%s4 + $0x4] sm:$0xf] %v727
  // Predicated region
  $region18: #{resnet_block_forward.1} parent=0 // pred_check
    _
  $region19: #{resnet_block_forward.1} parent=0 // pred_check_branch
    %733 = sbr.rel (0) target = $region21
  $region20: #{resnet_block_forward.1} parent=0 // pred_region
    _
  $region21: #{resnet_block_forward.1} parent=0 // pred_fallthru
    _
  // Predicated region
  $region22: #{resnet_block_forward.1} parent=0 // pred_check
    _
  $region23: #{resnet_block_forward.1} parent=0 // pred_check_branch
    %735 = sbr.rel (0) target = $region25
  $region24: #{resnet_block_forward.1} parent=0 // pred_region
    _
  $region25: #{resnet_block_forward.1} parent=0 // pred_fallthru
    _

</llo_original>
